<compile_context>
chip_gen: v6e
topology: v6e:2x2x1
jax: 0.10.0
libtpu: 0.0.40
codegen_flags: <defaults>
</compile_context>

<pallas_src>
import functools

import jax
import jax.numpy as jnp
from jax.experimental import pallas as pl
from jax.experimental.pallas import tpu as pltpu


def _channel_attention_kernel(x_ref, o_ref, sum_sc, max_sc, *,
                              hw, tile, needs_mask):
    """Fused avg-pool + max-pool + add + sigmoid over the spatial (lane) axis.

    x_ref  : (BN, CB, T)   input tile (spatial along lanes)
    o_ref  : (BN, CB, 1)   sigmoid(mean + max)
    sum_sc : (BN, CB, 1)   f32 running spatial sum
    max_sc : (BN, CB, 1)   f32 running spatial max
    """
    s = pl.program_id(2)
    last = pl.num_programs(2) - 1

    @pl.when(s == 0)
    def _init():
        sum_sc[...] = jnp.zeros_like(sum_sc)
        max_sc[...] = jnp.full_like(max_sc, -jnp.inf)

    x = x_ref[...].astype(jnp.float32)                       # (BN, CB, T)

    if needs_mask:
        # Only the last spatial tile overruns hw; keep the hot path unmasked.
        @pl.when(s < last)
        def _full_tile():
            sum_sc[...] += jnp.sum(x, axis=-1, keepdims=True)
            max_sc[...] = jnp.maximum(max_sc[...],
                                      jnp.max(x, axis=-1, keepdims=True))

        @pl.when(s == last)
        def _ragged_tile():
            lane = jax.lax.broadcasted_iota(jnp.int32, (1, 1, x.shape[-1]), 2)
            valid = (s * tile + lane) < hw                   # broadcasts vs x
            sum_sc[...] += jnp.sum(jnp.where(valid, x, 0.0),
                                   axis=-1, keepdims=True)
            max_sc[...] = jnp.maximum(
                max_sc[...],
                jnp.max(jnp.where(valid, x, -jnp.inf), axis=-1, keepdims=True))
    else:
        sum_sc[...] += jnp.sum(x, axis=-1, keepdims=True)
        max_sc[...] = jnp.maximum(max_sc[...],
                                  jnp.max(x, axis=-1, keepdims=True))

    @pl.when(s == last)
    def _finalize():
        z = sum_sc[...] * (1.0 / hw) + max_sc[...]           # mean + max
        o_ref[...] = (1.0 / (1.0 + jnp.exp(-z))).astype(o_ref.dtype)


def _vmem_capacity_bytes():
    try:
        return int(pltpu.get_tpu_info().vmem_capacity_bytes)
    except Exception:
        return 64 * 1024 * 1024          # conservative floor (v7x per-core VMEM)


def _plan_tiles(N, C, hw, itemsize):
    """Pick (BN, CB, T, n_sp, needs_mask, vmem_limit) from a VMEM byte budget."""
    cap = _vmem_capacity_bytes()
    vmem_limit = cap // 2                          # scoped limit requested
    elem_budget = (cap // 8) // 4                  # per-block elems (f32-costed)

    sub = 8 * max(1, 4 // max(1, itemsize))        # 8 f32 / 16 bf16 / 32 int8

    # ---- spatial tile T (lane axis) ----
    if hw * sub <= elem_budget:
        T, n_sp, needs_mask = hw, 1, False         # whole spatial extent at once
    else:
        t_cap = (elem_budget // sub // 128) * 128
        T = 0
        t = t_cap
        while t >= max(128, t_cap // 4):           # near-budget exact divisor?
            if hw % t == 0:
                T = t
                break
            t -= 128
        if T:
            needs_mask = False
        else:
            # Ragged last tile: shrink T so the masked branch's temporaries fit.
            T = max(128, (t_cap // 3 // 128) * 128)
            needs_mask = (hw % T) != 0
        n_sp = pl.cdiv(hw, T)

    # ---- rows (batch * channel) per block ----
    rows_cap = min(max(sub, elem_budget // T), 2048)   # 2048 rows caps scratch

    CB = min(C, max(sub, (rows_cap // sub) * sub))
    total_bytes = N * C * hw * itemsize
    # Give v7x's second TensorCore work when N == 1 (channel-split the grid).
    if N * pl.cdiv(C, CB) < 2 and C >= 2 * sub and (n_sp > 1 or
                                                    total_bytes >= (2 << 20)):
        CB = min(CB, pl.cdiv(pl.cdiv(C, 2), sub) * sub)

    if n_sp == 1 and CB >= C:
        BN = max(1, min(N, rows_cap // max(C, 1)))      # amortize small hw
        if N >= 2 and BN >= N and total_bytes >= (2 << 20):
            BN = pl.cdiv(N, 2)                          # keep a >1-trip parallel axis
    else:
        BN = 1

    return BN, CB, T, n_sp, needs_mask, vmem_limit


def channel_attention_pallas(x_nchw):
    """ChannelAttention.forward. Input NCHW, output (N, C, 1, 1) like PyTorch."""
    N, C, H, W = x_nchw.shape
    hw = H * W
    dtype = x_nchw.dtype
    itemsize = jnp.dtype(dtype).itemsize
    x_flat = x_nchw.reshape(N, C, hw)                   # free contiguous reshape

    BN, CB, T, n_sp, needs_mask, vmem_limit = _plan_tiles(N, C, hw, itemsize)
    grid = (pl.cdiv(N, BN), pl.cdiv(C, CB), n_sp)       # reduction axis last

    kernel = functools.partial(_channel_attention_kernel,
                               hw=hw, tile=T, needs_mask=needs_mask)

    out = pl.pallas_call(
        kernel,
        out_shape=jax.ShapeDtypeStruct((N, C, 1), dtype),
        grid=grid,
        in_specs=[pl.BlockSpec((BN, CB, T), lambda b, c, s: (b, c, s))],
        out_specs=pl.BlockSpec((BN, CB, 1), lambda b, c, s: (b, c, 0)),
        scratch_shapes=[pltpu.VMEM((BN, CB, 1), jnp.float32),
                        pltpu.VMEM((BN, CB, 1), jnp.float32)],
        compiler_params=pltpu.CompilerParams(
            dimension_semantics=("parallel", "parallel", "arbitrary"),
            vmem_limit_bytes=int(vmem_limit)),
        cost_estimate=pl.CostEstimate(
            flops=2 * N * C * hw + 4 * N * C,
            transcendentals=N * C,
            bytes_accessed=N * C * hw * itemsize + N * C * itemsize),
    )(x_flat)
    return out.reshape(N, C, 1, 1)


# ---------------- pure-JAX reference (for correctness check) -----------------
def channel_attention_ref(x_nchw):
    avg = jnp.mean(x_nchw, axis=(2, 3), keepdims=True)
    mx = jnp.max(x_nchw, axis=(2, 3), keepdims=True)
    return jax.nn.sigmoid(avg + mx)


if __name__ == "__main__":
    key = jax.random.PRNGKey(0)
    # in_channels must be >= 16 for the (unused) fc sub-module to be
    # constructible in PyTorch, so use a small but valid channel count.
    N, C, H, W = 2, 32, 16, 16
    x = jax.random.normal(key, (N, C, H, W), jnp.float32)

    out = channel_attention_pallas(x)
    out = jax.block_until_ready(out)
    assert out.shape == (N, C, 1, 1)

    ref = channel_attention_ref(x)
    assert jnp.allclose(out, ref, atol=1e-5, rtol=1e-5), (
        float(jnp.max(jnp.abs(out - ref))))

    print("KERNEL_OK")
</pallas_src>

<mosaic_0001>
module attributes {stable_mosaic.version = 11 : i64} {
  func.func @_channel_attention_kernel(%arg0: i32, %arg1: i32, %arg2: i32, %arg3: memref<2x32x256xf32, #tpu.memory_space<vmem>>, %arg4: memref<2x32x1xf32, #tpu.memory_space<vmem>>, %arg5: memref<2x32x1xf32, #tpu.memory_space<vmem>>, %arg6: memref<2x32x1xf32, #tpu.memory_space<vmem>>) attributes {dimension_semantics = [#tpu.dimension_semantics<parallel>, #tpu.dimension_semantics<parallel>, #tpu.dimension_semantics<arbitrary>], iteration_bounds = array<i64: 1, 1, 1>, scalar_prefetch = 0 : i64, scratch_operands = 2 : i64, tpu.core_type = #tpu.core_type<tc>, window_params = [{transform_indices = @transform_0, window_bounds = array<i64: 2, 32, 256>}, {transform_indices = @transform_1, window_bounds = array<i64: 2, 32, 1>}]} {
    %c0_i32 = arith.constant 0 : i32
    %0 = arith.cmpi eq, %arg2, %c0_i32 : i32
    %1 = arith.extui %0 : i1 to i32
    %c0_i32_0 = arith.constant 0 : i32
    %2 = arith.cmpi ne, %1, %c0_i32_0 : i32
    scf.if %2 {
      %cst_18 = arith.constant 0.000000e+00 : f32
      %17 = vector.broadcast %cst_18 : f32 to vector<2x32x1xf32>
      %c0_19 = arith.constant 0 : index
      %c0_20 = arith.constant 0 : index
      %c0_21 = arith.constant 0 : index
      %18 = vector.load %arg5[%c0_19, %c0_20, %c0_21] : memref<2x32x1xf32, #tpu.memory_space<vmem>>, vector<2x32x1xf32>
      tpu.vector_store %arg5[%c0_19, %c0_20, %c0_21], %17 {strides = array<i32>} : memref<2x32x1xf32, #tpu.memory_space<vmem>>, vector<2x32x1xf32>,
      %cst_22 = arith.constant 0xFF800000 : f32
      %19 = vector.broadcast %cst_22 : f32 to vector<2x32x1xf32>
      %c0_23 = arith.constant 0 : index
      %c0_24 = arith.constant 0 : index
      %c0_25 = arith.constant 0 : index
      %20 = vector.load %arg6[%c0_23, %c0_24, %c0_25] : memref<2x32x1xf32, #tpu.memory_space<vmem>>, vector<2x32x1xf32>
      tpu.vector_store %arg6[%c0_23, %c0_24, %c0_25], %19 {strides = array<i32>} : memref<2x32x1xf32, #tpu.memory_space<vmem>>, vector<2x32x1xf32>,
    } else {
    }
    %c0 = arith.constant 0 : index
    %c0_1 = arith.constant 0 : index
    %c0_2 = arith.constant 0 : index
    %3 = vector.load %arg3[%c0, %c0_1, %c0_2] : memref<2x32x256xf32, #tpu.memory_space<vmem>>, vector<2x32x256xf32>
    %c0_3 = arith.constant 0 : index
    %c0_4 = arith.constant 0 : index
    %c0_5 = arith.constant 0 : index
    %4 = vector.load %arg5[%c0_3, %c0_4, %c0_5] : memref<2x32x1xf32, #tpu.memory_space<vmem>>, vector<2x32x1xf32>
    %cst = arith.constant dense<0.000000e+00> : vector<2x32xf32>
    %5 = vector.multi_reduction <add>, %3, %cst [2] : vector<2x32x256xf32> to vector<2x32xf32>
    %6 = vector.shape_cast %5 : vector<2x32xf32> to vector<2x32x1xf32>
    %7 = arith.addf %4, %6 : vector<2x32x1xf32>
    %c0_6 = arith.constant 0 : index
    %c0_7 = arith.constant 0 : index
    %c0_8 = arith.constant 0 : index
    %8 = vector.load %arg5[%c0_6, %c0_7, %c0_8] : memref<2x32x1xf32, #tpu.memory_space<vmem>>, vector<2x32x1xf32>
    tpu.vector_store %arg5[%c0_6, %c0_7, %c0_8], %7 {strides = array<i32>} : memref<2x32x1xf32, #tpu.memory_space<vmem>>, vector<2x32x1xf32>,
    %c0_9 = arith.constant 0 : index
    %c0_10 = arith.constant 0 : index
    %c0_11 = arith.constant 0 : index
    %9 = vector.load %arg6[%c0_9, %c0_10, %c0_11] : memref<2x32x1xf32, #tpu.memory_space<vmem>>, vector<2x32x1xf32>
    %cst_12 = arith.constant dense<0xFF800000> : vector<2x32xf32>
    %10 = vector.multi_reduction <maximumf>, %3, %cst_12 [2] : vector<2x32x256xf32> to vector<2x32xf32>
    %11 = vector.shape_cast %10 : vector<2x32xf32> to vector<2x32x1xf32>
    %12 = arith.maximumf %9, %11 : vector<2x32x1xf32>
    %c0_13 = arith.constant 0 : index
    %c0_14 = arith.constant 0 : index
    %c0_15 = arith.constant 0 : index
    %13 = vector.load %arg6[%c0_13, %c0_14, %c0_15] : memref<2x32x1xf32, #tpu.memory_space<vmem>>, vector<2x32x1xf32>
    tpu.vector_store %arg6[%c0_13, %c0_14, %c0_15], %12 {strides = array<i32>} : memref<2x32x1xf32, #tpu.memory_space<vmem>>, vector<2x32x1xf32>,
    %c0_i32_16 = arith.constant 0 : i32
    %14 = arith.cmpi eq, %arg2, %c0_i32_16 : i32
    %15 = arith.extui %14 : i1 to i32
    %c0_i32_17 = arith.constant 0 : i32
    %16 = arith.cmpi ne, %15, %c0_i32_17 : i32
    scf.if %16 {
      %c0_18 = arith.constant 0 : index
      %c0_19 = arith.constant 0 : index
      %c0_20 = arith.constant 0 : index
      %17 = vector.load %arg5[%c0_18, %c0_19, %c0_20] : memref<2x32x1xf32, #tpu.memory_space<vmem>>, vector<2x32x1xf32>
      %cst_21 = arith.constant 3.906250e-03 : f32
      %18 = vector.broadcast %cst_21 : f32 to vector<2x32x1xf32>
      %19 = arith.mulf %17, %18 : vector<2x32x1xf32>
      %c0_22 = arith.constant 0 : index
      %c0_23 = arith.constant 0 : index
      %c0_24 = arith.constant 0 : index
      %20 = vector.load %arg6[%c0_22, %c0_23, %c0_24] : memref<2x32x1xf32, #tpu.memory_space<vmem>>, vector<2x32x1xf32>
      %21 = arith.addf %19, %20 : vector<2x32x1xf32>
      %cst_25 = arith.constant 0.000000e+00 : f32
      %22 = vector.broadcast %cst_25 : f32 to vector<2x32x1xf32>
      %23 = arith.subf %22, %21 : vector<2x32x1xf32>
      %24 = math.exp %23 : vector<2x32x1xf32>
      %cst_26 = arith.constant 1.000000e+00 : f32
      %25 = vector.broadcast %cst_26 : f32 to vector<2x32x1xf32>
      %26 = arith.addf %25, %24 : vector<2x32x1xf32>
      %cst_27 = arith.constant 1.000000e+00 : f32
      %27 = vector.broadcast %cst_27 : f32 to vector<2x32x1xf32>
      %28 = arith.divf %27, %26 : vector<2x32x1xf32>
      %c0_28 = arith.constant 0 : index
      %c0_29 = arith.constant 0 : index
      %c0_30 = arith.constant 0 : index
      %29 = vector.load %arg4[%c0_28, %c0_29, %c0_30] : memref<2x32x1xf32, #tpu.memory_space<vmem>>, vector<2x32x1xf32>
      tpu.vector_store %arg4[%c0_28, %c0_29, %c0_30], %28 {strides = array<i32>} : memref<2x32x1xf32, #tpu.memory_space<vmem>>, vector<2x32x1xf32>,
    } else {
    }
    return
  }
  func.func @transform_0(%arg0: i32, %arg1: i32, %arg2: i32) -> (i32, i32, i32) {
    %c0_i32 = arith.constant 0 : i32
    return %arg0, %arg1, %arg2 : i32, i32, i32
  }
  func.func @transform_1(%arg0: i32, %arg1: i32, %arg2: i32) -> (i32, i32, i32) {
    %c0_i32 = arith.constant 0 : i32
    %c0_i32_0 = arith.constant 0 : i32
    return %arg0, %arg1, %c0_i32 : i32, i32, i32
  }
}

</mosaic_0001>

<llo_original>
// kernel: tpu_custom_call.1
$region0: #{tpu_custom_call.1}
  #allocation0 [shape = 'u32[]', space=smem, size = 0x4, offset = 0x4, fixed_abs, tag = 'smem constant byte address 0x4 - core index']
  #allocation1 [shape = 'u32[144,128]{1,0:T(1,128)}', space=vmem, size = 0x12000, scoped, tag = 'internal scratch']
  #allocation2 [shape = 'f32[2,32,1]{2,1,0:T(8,128)}', space=vmem, size = 0x8000, scoped, tag = 'scratch operand']
  #allocation3 [shape = 'f32[2,32,1]{2,1,0:T(8,128)}', space=vmem, size = 0x8000, scoped, tag = 'scratch operand']
  %s0 = inlined_call_operand.hbm [shape: f32[2,32,256], index: 0, kind: input, shape index: {}]
  %s1 = inlined_call_operand.vmem [shape: f32[2,32,1], index: 1, kind: output, shape index: {}]
  %s2 = sld [smem:[#allocation0]]
  $region26: #{tpu_custom_call.1} parent=0
    _
  %s4 = ssub.s32 1, %s2
  %s5 = scalar_select 0, %s4, %s2
  $region1: #{tpu_custom_call.1} parent=0
    #allocation4 [shape = 'u8[65536]{0}', space=vmem, size = 0x10000, scoped, tag = 'input window, operand 0, single buffered']
    #allocation5 [shape = 's32[1]{0}', space=sflag, size = 0x4, scoped, tag = 'scoped memory for tpu_custom_call.1']
    %6 = vsyncpa [#allocation5], 0
    // Predicated region
    $region2: #{tpu_custom_call.1} parent=1 // pred_check
      _
    $region3: #{tpu_custom_call.1} parent=1 // pred_check_branch
      %8 = sbr.rel (0) target = $region5
    $region4: #{tpu_custom_call.1} parent=1 // pred_region
      %s10 = ssub.s32 2048, 2048
      %11 = vsyncadd [#allocation5], %s10
      %s12 = sshll.u32 [#allocation4], 4
      %s13 = int_to_ptr.vmem [resolvable:$true] %s12
      %18 = dma.hbm_to_vmem [thread:$0]  %s0, 2048, %s13, [#allocation5], 256, 256, 16
    $region5: #{tpu_custom_call.1} parent=1 // pred_fallthru
      _
    // Predicated region
    $region6: #{tpu_custom_call.1} parent=1 // pred_check
      _
    $region7: #{tpu_custom_call.1} parent=1 // pred_check_branch
      %20 = sbr.rel (0) target = $region9
    $region8: #{tpu_custom_call.1} parent=1 // pred_region
      %21 = dma.done [#allocation5], 2048
    $region9: #{tpu_custom_call.1} parent=1 // pred_fallthru
      _
    %p22 = scmp.eq.s32.totalorder 0, 0
    // Predicated region
    $region10: #{tpu_custom_call.1} parent=1 // pred_check
      %p23 = pneg %p22
    $region11: #{tpu_custom_call.1} parent=1 // pred_check_branch
      %25 = sbr.rel (%p23) target = $region13
    $region12: #{tpu_custom_call.1} parent=1 // pred_region
      %vm26 = vcmask 7168
      %27 = vst.msk [vmem:[#allocation2] sm:$0xff] %vm26, 0.0
      %28 = vst.msk [vmem:[#allocation2 + $0x8] sm:$0xff] %vm26, 0.0
      %29 = vst.msk [vmem:[#allocation2 + $0x10] sm:$0xff] %vm26, 0.0
      %30 = vst.msk [vmem:[#allocation2 + $0x18] sm:$0xff] %vm26, 0.0
      %31 = vst.msk [vmem:[#allocation2 + $0x20] sm:$0xff] %vm26, 0.0
      %32 = vst.msk [vmem:[#allocation2 + $0x28] sm:$0xff] %vm26, 0.0
      %33 = vst.msk [vmem:[#allocation2 + $0x30] sm:$0xff] %vm26, 0.0
      %34 = vst.msk [vmem:[#allocation2 + $0x38] sm:$0xff] %vm26, 0.0
      %35 = vst.msk [vmem:[#allocation3] sm:$0xff] %vm26, -inf
      %36 = vst.msk [vmem:[#allocation3 + $0x8] sm:$0xff] %vm26, -inf
      %37 = vst.msk [vmem:[#allocation3 + $0x10] sm:$0xff] %vm26, -inf
      %38 = vst.msk [vmem:[#allocation3 + $0x18] sm:$0xff] %vm26, -inf
      %39 = vst.msk [vmem:[#allocation3 + $0x20] sm:$0xff] %vm26, -inf
      %40 = vst.msk [vmem:[#allocation3 + $0x28] sm:$0xff] %vm26, -inf
      %41 = vst.msk [vmem:[#allocation3 + $0x30] sm:$0xff] %vm26, -inf
      %42 = vst.msk [vmem:[#allocation3 + $0x38] sm:$0xff] %vm26, -inf
    $region13: #{tpu_custom_call.1} parent=1 // pred_fallthru
      _
    %v43 = vld [vmem:[#allocation4] sm:$0xff]
    %v44 = vld [vmem:[#allocation4 + $0x8] sm:$0xff]
    %v45 = vld [vmem:[#allocation4 + $0x10] sm:$0xff]
    %v46 = vld [vmem:[#allocation4 + $0x18] sm:$0xff]
    %v47 = vld [vmem:[#allocation4 + $0x20] sm:$0xff]
    %v48 = vld [vmem:[#allocation4 + $0x28] sm:$0xff]
    %v49 = vld [vmem:[#allocation4 + $0x30] sm:$0xff]
    %v50 = vld [vmem:[#allocation4 + $0x38] sm:$0xff]
    %v51 = vld [vmem:[#allocation4 + $0x40] sm:$0xff]
    %v52 = vld [vmem:[#allocation4 + $0x48] sm:$0xff]
    %v53 = vld [vmem:[#allocation4 + $0x50] sm:$0xff]
    %v54 = vld [vmem:[#allocation4 + $0x58] sm:$0xff]
    %v55 = vld [vmem:[#allocation4 + $0x60] sm:$0xff]
    %v56 = vld [vmem:[#allocation4 + $0x68] sm:$0xff]
    %v57 = vld [vmem:[#allocation4 + $0x70] sm:$0xff]
    %v58 = vld [vmem:[#allocation4 + $0x78] sm:$0xff]
    %v59 = vld [vmem:[#allocation2] sm:$0xff]
    %v60 = vld [vmem:[#allocation2 + $0x8] sm:$0xff]
    %v61 = vld [vmem:[#allocation2 + $0x10] sm:$0xff]
    %v62 = vld [vmem:[#allocation2 + $0x18] sm:$0xff]
    %v63 = vld [vmem:[#allocation2 + $0x20] sm:$0xff]
    %v64 = vld [vmem:[#allocation2 + $0x28] sm:$0xff]
    %v65 = vld [vmem:[#allocation2 + $0x30] sm:$0xff]
    %v66 = vld [vmem:[#allocation2 + $0x38] sm:$0xff]
    %v67 = vadd.f32 %v43, %v44
    %68 = vadd.xlane.f32.xlu0 %v67
    %v69 = vpop.xlane.xlu0 %68
    %v70 = vadd.f32 %v45, %v46
    %71 = vadd.xlane.f32.xlu0 %v70
    %v72 = vpop.xlane.xlu0 %71
    %v73 = vadd.f32 %v47, %v48
    %74 = vadd.xlane.f32.xlu0 %v73
    %v75 = vpop.xlane.xlu0 %74
    %v76 = vadd.f32 %v49, %v50
    %77 = vadd.xlane.f32.xlu0 %v76
    %v78 = vpop.xlane.xlu0 %77
    %v79 = vadd.f32 %v51, %v52
    %80 = vadd.xlane.f32.xlu0 %v79
    %v81 = vpop.xlane.xlu0 %80
    %v82 = vadd.f32 %v53, %v54
    %83 = vadd.xlane.f32.xlu0 %v82
    %v84 = vpop.xlane.xlu0 %83
    %v85 = vadd.f32 %v55, %v56
    %86 = vadd.xlane.f32.xlu0 %v85
    %v87 = vpop.xlane.xlu0 %86
    %v88 = vadd.f32 %v57, %v58
    %89 = vadd.xlane.f32.xlu0 %v88
    %v90 = vpop.xlane.xlu0 %89
    %v91 = vadd.f32 %v59, %v69
    %v92 = vadd.f32 %v60, %v72
    %v93 = vadd.f32 %v61, %v75
    %v94 = vadd.f32 %v62, %v78
    %v95 = vadd.f32 %v63, %v81
    %v96 = vadd.f32 %v64, %v84
    %v97 = vadd.f32 %v65, %v87
    %v98 = vadd.f32 %v66, %v90
    %vm99 = vcmask 7168
    %100 = vst.msk [vmem:[#allocation2] sm:$0xff] %vm99, %v91
    %101 = vst.msk [vmem:[#allocation2 + $0x8] sm:$0xff] %vm99, %v92
    %102 = vst.msk [vmem:[#allocation2 + $0x10] sm:$0xff] %vm99, %v93
    %103 = vst.msk [vmem:[#allocation2 + $0x18] sm:$0xff] %vm99, %v94
    %104 = vst.msk [vmem:[#allocation2 + $0x20] sm:$0xff] %vm99, %v95
    %105 = vst.msk [vmem:[#allocation2 + $0x28] sm:$0xff] %vm99, %v96
    %106 = vst.msk [vmem:[#allocation2 + $0x30] sm:$0xff] %vm99, %v97
    %107 = vst.msk [vmem:[#allocation2 + $0x38] sm:$0xff] %vm99, %v98
    %v108 = vld [vmem:[#allocation3] sm:$0xff]
    %v109 = vld [vmem:[#allocation3 + $0x8] sm:$0xff]
    %v110 = vld [vmem:[#allocation3 + $0x10] sm:$0xff]
    %v111 = vld [vmem:[#allocation3 + $0x18] sm:$0xff]
    %v112 = vld [vmem:[#allocation3 + $0x20] sm:$0xff]
    %v113 = vld [vmem:[#allocation3 + $0x28] sm:$0xff]
    %v114 = vld [vmem:[#allocation3 + $0x30] sm:$0xff]
    %v115 = vld [vmem:[#allocation3 + $0x38] sm:$0xff]
    %v116 = vmax.f32 %v43, %v44
    %117 = vmax.xlane.f32.xlu0 %v116
    %v118 = vpop.xlane.xlu0 %117
    %v119 = vmax.f32 %v45, %v46
    %120 = vmax.xlane.f32.xlu0 %v119
    %v121 = vpop.xlane.xlu0 %120
    %v122 = vmax.f32 %v47, %v48
    %123 = vmax.xlane.f32.xlu0 %v122
    %v124 = vpop.xlane.xlu0 %123
    %v125 = vmax.f32 %v49, %v50
    %126 = vmax.xlane.f32.xlu0 %v125
    %v127 = vpop.xlane.xlu0 %126
    %v128 = vmax.f32 %v51, %v52
    %129 = vmax.xlane.f32.xlu0 %v128
    %v130 = vpop.xlane.xlu0 %129
    %v131 = vmax.f32 %v53, %v54
    %132 = vmax.xlane.f32.xlu0 %v131
    %v133 = vpop.xlane.xlu0 %132
    %v134 = vmax.f32 %v55, %v56
    %135 = vmax.xlane.f32.xlu0 %v134
    %v136 = vpop.xlane.xlu0 %135
    %v137 = vmax.f32 %v57, %v58
    %138 = vmax.xlane.f32.xlu0 %v137
    %v139 = vpop.xlane.xlu0 %138
    %v140 = vmax.f32 %v108, %v118
    %v141 = vmax.f32 %v109, %v121
    %v142 = vmax.f32 %v110, %v124
    %v143 = vmax.f32 %v111, %v127
    %v144 = vmax.f32 %v112, %v130
    %v145 = vmax.f32 %v113, %v133
    %v146 = vmax.f32 %v114, %v136
    %v147 = vmax.f32 %v115, %v139
    %148 = vst.msk [vmem:[#allocation3] sm:$0xff] %vm99, %v140
    %149 = vst.msk [vmem:[#allocation3 + $0x8] sm:$0xff] %vm99, %v141
    %150 = vst.msk [vmem:[#allocation3 + $0x10] sm:$0xff] %vm99, %v142
    %151 = vst.msk [vmem:[#allocation3 + $0x18] sm:$0xff] %vm99, %v143
    %152 = vst.msk [vmem:[#allocation3 + $0x20] sm:$0xff] %vm99, %v144
    %153 = vst.msk [vmem:[#allocation3 + $0x28] sm:$0xff] %vm99, %v145
    %154 = vst.msk [vmem:[#allocation3 + $0x30] sm:$0xff] %vm99, %v146
    %155 = vst.msk [vmem:[#allocation3 + $0x38] sm:$0xff] %vm99, %v147
    // Predicated region
    $region14: #{tpu_custom_call.1} parent=1 // pred_check
      %p156 = pneg %p22
    $region15: #{tpu_custom_call.1} parent=1 // pred_check_branch
      %158 = sbr.rel (%p156) target = $region17
    $region16: #{tpu_custom_call.1} parent=1 // pred_region
      %v159 = vld [vmem:[#allocation2] sm:$0xff]
      %v160 = vld [vmem:[#allocation2 + $0x8] sm:$0xff]
      %v161 = vld [vmem:[#allocation2 + $0x10] sm:$0xff]
      %v162 = vld [vmem:[#allocation2 + $0x18] sm:$0xff]
      %v163 = vld [vmem:[#allocation2 + $0x20] sm:$0xff]
      %v164 = vld [vmem:[#allocation2 + $0x28] sm:$0xff]
      %v165 = vld [vmem:[#allocation2 + $0x30] sm:$0xff]
      %v166 = vld [vmem:[#allocation2 + $0x38] sm:$0xff]
      %v167 = vmul.f32 %v159, 0.00390625
      %v168 = vmul.f32 %v160, 0.00390625
      %v169 = vmul.f32 %v161, 0.00390625
      %v170 = vmul.f32 %v162, 0.00390625
      %v171 = vmul.f32 %v163, 0.00390625
      %v172 = vmul.f32 %v164, 0.00390625
      %v173 = vmul.f32 %v165, 0.00390625
      %v174 = vmul.f32 %v166, 0.00390625
      %v175 = vld [vmem:[#allocation3] sm:$0xff]
      %v176 = vld [vmem:[#allocation3 + $0x8] sm:$0xff]
      %v177 = vld [vmem:[#allocation3 + $0x10] sm:$0xff]
      %v178 = vld [vmem:[#allocation3 + $0x18] sm:$0xff]
      %v179 = vld [vmem:[#allocation3 + $0x20] sm:$0xff]
      %v180 = vld [vmem:[#allocation3 + $0x28] sm:$0xff]
      %v181 = vld [vmem:[#allocation3 + $0x30] sm:$0xff]
      %v182 = vld [vmem:[#allocation3 + $0x38] sm:$0xff]
      %v183 = vadd.f32 %v167, %v175
      %v184 = vadd.f32 %v168, %v176
      %v185 = vadd.f32 %v169, %v177
      %v186 = vadd.f32 %v170, %v178
      %v187 = vadd.f32 %v171, %v179
      %v188 = vadd.f32 %v172, %v180
      %v189 = vadd.f32 %v173, %v181
      %v190 = vadd.f32 %v174, %v182
      %v191 = vsub.f32 0.0, %v183
      %v192 = vsub.f32 0.0, %v184
      %v193 = vsub.f32 0.0, %v185
      %v194 = vsub.f32 0.0, %v186
      %v195 = vsub.f32 0.0, %v187
      %v196 = vsub.f32 0.0, %v188
      %v197 = vsub.f32 0.0, %v189
      %v198 = vsub.f32 0.0, %v190
      %v199 = vmul.f32 %v191, 1.442695
      %v200 = vpow.pop %v199
      %v201 = vmul.f32 %v192, 1.442695
      %v202 = vpow.pop %v201
      %v203 = vmul.f32 %v193, 1.442695
      %v204 = vpow.pop %v203
      %v205 = vmul.f32 %v194, 1.442695
      %v206 = vpow.pop %v205
      %v207 = vmul.f32 %v195, 1.442695
      %v208 = vpow.pop %v207
      %v209 = vmul.f32 %v196, 1.442695
      %v210 = vpow.pop %v209
      %v211 = vmul.f32 %v197, 1.442695
      %v212 = vpow.pop %v211
      %v213 = vmul.f32 %v198, 1.442695
      %v214 = vpow.pop %v213
      %v215 = vadd.f32 %v200, 1.0
      %v216 = vadd.f32 %v202, 1.0
      %v217 = vadd.f32 %v204, 1.0
      %v218 = vadd.f32 %v206, 1.0
      %v219 = vadd.f32 %v208, 1.0
      %v220 = vadd.f32 %v210, 1.0
      %v221 = vadd.f32 %v212, 1.0
      %v222 = vadd.f32 %v214, 1.0
      %v223 = vrcp.pop %v215
      %v224 = vmul.f32 1.0, %v223
      %v225 = vrcp.pop %v216
      %v226 = vmul.f32 1.0, %v225
      %v227 = vrcp.pop %v217
      %v228 = vmul.f32 1.0, %v227
      %v229 = vrcp.pop %v218
      %v230 = vmul.f32 1.0, %v229
      %v231 = vrcp.pop %v219
      %v232 = vmul.f32 1.0, %v231
      %v233 = vrcp.pop %v220
      %v234 = vmul.f32 1.0, %v233
      %v235 = vrcp.pop %v221
      %v236 = vmul.f32 1.0, %v235
      %v237 = vrcp.pop %v222
      %v238 = vmul.f32 1.0, %v237
      %239 = vst.msk [vmem:[%s1] sm:$0xff] %vm99, %v224
      %240 = vst.msk [vmem:[%s1 + $0x8] sm:$0xff] %vm99, %v226
      %241 = vst.msk [vmem:[%s1 + $0x10] sm:$0xff] %vm99, %v228
      %242 = vst.msk [vmem:[%s1 + $0x18] sm:$0xff] %vm99, %v230
      %243 = vst.msk [vmem:[%s1 + $0x20] sm:$0xff] %vm99, %v232
      %244 = vst.msk [vmem:[%s1 + $0x28] sm:$0xff] %vm99, %v234
      %245 = vst.msk [vmem:[%s1 + $0x30] sm:$0xff] %vm99, %v236
      %246 = vst.msk [vmem:[%s1 + $0x38] sm:$0xff] %vm99, %v238
    $region17: #{tpu_custom_call.1} parent=1 // pred_fallthru
      _
    // Predicated region
    $region18: #{tpu_custom_call.1} parent=1 // pred_check
      _
    $region19: #{tpu_custom_call.1} parent=1 // pred_check_branch
      %248 = sbr.rel (0) target = $region21
    $region20: #{tpu_custom_call.1} parent=1 // pred_region
      _
    $region21: #{tpu_custom_call.1} parent=1 // pred_fallthru
      _
    // Predicated region
    $region22: #{tpu_custom_call.1} parent=1 // pred_check
      _
    $region23: #{tpu_custom_call.1} parent=1 // pred_check_branch
      %250 = sbr.rel (0) target = $region25
    $region24: #{tpu_custom_call.1} parent=1 // pred_region
      _
    $region25: #{tpu_custom_call.1} parent=1 // pred_fallthru
      _
    %251 = vsyncpa [#allocation5], 1

</llo_original>
